<compile_context>
chip_gen: v5e
topology: v5e:2x2
jax: 0.10.0
libtpu: 0.0.40
codegen_flags: <defaults>
</compile_context>

<pallas_src>
import functools
import math

import jax
import jax.numpy as jnp
from jax import lax
from jax.experimental import pallas as pl
from jax.experimental.pallas import tpu as pltpu

NEG_INF = -1.0e10
EPSILON = 1e-10

# Defaults target v6e/v7x (2x256x256 MXU).  block_kv=128 may be preferable on
# v5e (4x128x128 MXU); both are clamped to L.
DEFAULT_BLOCK_Q = 512
DEFAULT_BLOCK_KV = 256

# If the (double-buffered) K+V footprint per head fits this budget, keep K/V
# resident in VMEM for the whole head (read from HBM once per head).
DEFAULT_KV_RESIDENT_BUDGET = 12 * 1024 * 1024


def _flash_kernel(q_ref, k_ref, v_ref, o_ref, m_sc, l_sc, acc_sc, *,
                  scale, block_kv, kv_resident, compute_dtype):
    j = pl.program_id(2)

    @pl.when(j == 0)
    def _():
        m_sc[...] = jnp.full_like(m_sc, NEG_INF)
        l_sc[...] = jnp.zeros_like(l_sc)
        acc_sc[...] = jnp.zeros_like(acc_sc)

    q = q_ref[0]                                            # (tq, E)
    if kv_resident:
        # K/V hold the full (L, E) for this head; slice the current KV window.
        start = pl.multiple_of(j * block_kv, block_kv)
        k = k_ref[0, pl.ds(start, block_kv), :]             # (tk, E)
        v = v_ref[0, pl.ds(start, block_kv), :]             # (tk, E)
    else:
        k = k_ref[0]                                        # (tk, E)
        v = v_ref[0]                                        # (tk, E)

    if compute_dtype is not None:                           # bf16 MXU operands
        q = q.astype(compute_dtype)
        k = k.astype(compute_dtype)

    # S = scale * Q @ K^T, contracting the E dims (no materialized transpose).
    s = lax.dot_general(
        q, k, (((1,), (1,)), ((), ())),
        preferred_element_type=jnp.float32,
    ) * scale                                               # (tq, tk) f32

    m_prev = m_sc[...]                                      # (tq, 1)
    m_blk = jnp.max(s, axis=-1, keepdims=True)              # (tq, 1)
    m_new = jnp.maximum(m_prev, m_blk)                      # (tq, 1)

    p = jnp.exp(s - m_new)                                  # (tq, tk) f32
    alpha = jnp.exp(m_prev - m_new)                         # (tq, 1)
    # Reference adds EPSILON to each per-block row sum; the (unscaled) form is
    # numerically indistinguishable against a final denominator >= 1.
    l_blk = jnp.sum(p, axis=-1, keepdims=True) + EPSILON

    # P @ V on the MXU with f32 accumulation; operands in bf16 when enabled.
    pv_dtype = compute_dtype if compute_dtype is not None else v.dtype
    pv = jnp.dot(p.astype(pv_dtype), v.astype(pv_dtype),
                 preferred_element_type=jnp.float32)        # (tq, E) f32

    l_sc[...] = alpha * l_sc[...] + l_blk
    acc_sc[...] = alpha * acc_sc[...] + pv
    m_sc[...] = m_new

    @pl.when(j == pl.num_programs(2) - 1)
    def _():
        # Exact divide: runs once per Q tile, keeps parity with f32 reference.
        o_ref[0] = (acc_sc[...] / l_sc[...]).astype(o_ref.dtype)


def flash_attention(queries, keys, values, attn_mask=None, *,
                    block_q=DEFAULT_BLOCK_Q, block_kv=DEFAULT_BLOCK_KV,
                    use_bf16_matmul=True,
                    kv_resident_vmem_budget_bytes=DEFAULT_KV_RESIDENT_BUDGET):
    """Matches FlashAttention.forward: returns (output, None).

    queries/keys/values: (B, L, H, E)
    """
    assert attn_mask is None, "mask path not implemented (see TODO)"
    B, L, H, E = queries.shape
    scale = 1.0 / math.sqrt(E)

    # permute(0, 2, 1, 3) -> (B, H, L, E), flatten heads into batch.
    q = jnp.transpose(queries, (0, 2, 1, 3)).reshape(B * H, L, E)
    k = jnp.transpose(keys, (0, 2, 1, 3)).reshape(B * H, L, E)
    v = jnp.transpose(values, (0, 2, 1, 3)).reshape(B * H, L, E)

    tq = min(block_q, L)
    tk = min(block_kv, L)
    assert L % tq == 0 and L % tk == 0, (
        "sequence length must be a multiple of the Q/KV tile sizes")
    nq = L // tq
    nkv = L // tk

    itemsize = jnp.dtype(queries.dtype).itemsize
    # K+V footprint if head-resident (Pallas double-buffers each input block).
    kv_resident_bytes = 2 * 2 * L * E * itemsize
    kv_resident = kv_resident_bytes <= kv_resident_vmem_budget_bytes

    if use_bf16_matmul and queries.dtype == jnp.float32:
        compute_dtype = jnp.bfloat16
    else:
        compute_dtype = None  # inputs already low precision (or f32 parity off)

    kernel = functools.partial(
        _flash_kernel, scale=scale, block_kv=tk,
        kv_resident=kv_resident, compute_dtype=compute_dtype)

    if kv_resident:
        # Index map independent of qi/ki: K/V DMA'd from HBM once per head.
        kv_specs = [
            pl.BlockSpec((1, L, E), lambda bh, qi, ki: (bh, 0, 0)),
            pl.BlockSpec((1, L, E), lambda bh, qi, ki: (bh, 0, 0)),
        ]
        kv_vmem = kv_resident_bytes
    else:
        kv_specs = [
            pl.BlockSpec((1, tk, E), lambda bh, qi, ki: (bh, ki, 0)),
            pl.BlockSpec((1, tk, E), lambda bh, qi, ki: (bh, ki, 0)),
        ]
        kv_vmem = 2 * 2 * tk * E * itemsize

    # Rough VMEM requirement (double-buffered Q/O blocks + K/V + f32 scratch).
    vmem_need = (kv_vmem
                 + 2 * 2 * tq * E * itemsize          # Q + O blocks
                 + tq * E * 4 + 2 * tq * 4)           # acc + m + l scratch
    compiler_kwargs = dict(
        dimension_semantics=("parallel", "parallel", "arbitrary"))
    if vmem_need > (14 << 20):
        # Above the most-conservative scoped default (16 MiB on v5e); raise it.
        # NOTE: on v7x physical VMEM is 64 MiB -- keep the resident budget sane.
        compiler_kwargs["vmem_limit_bytes"] = int(min(vmem_need + (8 << 20),
                                                      100 << 20))

    cost = pl.CostEstimate(
        flops=int(4 * B * H * L * L * E),
        transcendentals=int(B * H * L * L),
        bytes_accessed=int(4 * B * L * H * E * itemsize),
    )

    out = pl.pallas_call(
        kernel,
        out_shape=jax.ShapeDtypeStruct((B * H, L, E), queries.dtype),
        grid_spec=pltpu.PrefetchScalarGridSpec(
            num_scalar_prefetch=0,
            grid=(B * H, nq, nkv),          # reduction (KV) axis last
            in_specs=[
                pl.BlockSpec((1, tq, E), lambda bh, qi, ki: (bh, qi, 0)),
            ] + kv_specs,
            out_specs=pl.BlockSpec((1, tq, E), lambda bh, qi, ki: (bh, qi, 0)),
            scratch_shapes=[
                pltpu.VMEM((tq, 1), jnp.float32),   # m (running row max)
                pltpu.VMEM((tq, 1), jnp.float32),   # l (running denom)
                pltpu.VMEM((tq, E), jnp.float32),   # acc (un-normalized O)
            ],
        ),
        compiler_params=pltpu.CompilerParams(**compiler_kwargs),
        cost_estimate=cost,
    )(q, k, v)

    out = out.reshape(B, H, L, E)
    out = jnp.transpose(out, (0, 2, 1, 3))  # back to (B, L, H, E), contiguous
    return out, None


def _reference(queries, keys, values):
    """Plain-JAX softmax attention (what the flash recurrence computes)."""
    B, L, H, E = queries.shape
    qh = jnp.transpose(queries, (0, 2, 1, 3)).astype(jnp.float32)
    kh = jnp.transpose(keys, (0, 2, 1, 3)).astype(jnp.float32)
    vh = jnp.transpose(values, (0, 2, 1, 3)).astype(jnp.float32)
    s = jnp.einsum("bhqe,bhke->bhqk", qh, kh) / math.sqrt(E)
    p = jax.nn.softmax(s, axis=-1)
    o = jnp.einsum("bhqk,bhke->bhqe", p, vh)
    return jnp.transpose(o, (0, 2, 1, 3))


def _check(B, L, H, E, seed, *, dtype=jnp.float32, atol=1e-4, rtol=1e-4,
           **kwargs):
    key = jax.random.PRNGKey(seed)
    kq, kk, kv = jax.random.split(key, 3)
    queries = jax.random.normal(kq, (B, L, H, E), dtype=jnp.float32).astype(dtype)
    keys = jax.random.normal(kk, (B, L, H, E), dtype=jnp.float32).astype(dtype)
    values = jax.random.normal(kv, (B, L, H, E), dtype=jnp.float32).astype(dtype)

    out, attn = flash_attention(queries, keys, values, attn_mask=None, **kwargs)
    out = jax.block_until_ready(out)

    ref = _reference(queries, keys, values)
    assert out.shape == (B, L, H, E)
    assert attn is None
    err = float(jnp.max(jnp.abs(out.astype(jnp.float32) - ref)))
    assert jnp.allclose(out.astype(jnp.float32), ref, atol=atol, rtol=rtol), (
        f"mismatch vs reference at (B,L,H,E)=({B},{L},{H},{E}) "
        f"kwargs={kwargs}: max abs err {err}"
    )


if __name__ == "__main__":
    # 1) Small shape, strict f32 MXU path, single tile, head-resident K/V.
    _check(B=2, L=64, H=4, E=32, seed=0, use_bf16_matmul=False)
    # 2) Multi-tile online softmax (4 Q tiles x 4 KV tiles), resident K/V,
    #    strict f32 path.
    _check(B=1, L=512, H=2, E=32, seed=1, block_q=128, block_kv=128,
           use_bf16_matmul=False)
    # 3) Same shape, streamed-K/V fallback path (budget=0) with bf16 MXU
    #    operands -> looser tolerance.
    _check(B=1, L=512, H=2, E=32, seed=2, block_q=128, block_kv=128,
           use_bf16_matmul=True, kv_resident_vmem_budget_bytes=0,
           atol=3e-2, rtol=3e-2)
    # 4) Native bf16 inputs with the default large tiles.
    _check(B=1, L=256, H=2, E=64, seed=3, dtype=jnp.bfloat16,
           atol=4e-2, rtol=4e-2)
    print("KERNEL_OK")
</pallas_src>

<mosaic_0001>
module attributes {stable_mosaic.version = 11 : i64} {
  func.func @_flash_kernel(%arg0: i32, %arg1: i32, %arg2: i32, %arg3: memref<1x64x32xf32, #tpu.memory_space<vmem>>, %arg4: memref<1x64x32xf32, #tpu.memory_space<vmem>>, %arg5: memref<1x64x32xf32, #tpu.memory_space<vmem>>, %arg6: memref<1x64x32xf32, #tpu.memory_space<vmem>>, %arg7: memref<64x1xf32, #tpu.memory_space<vmem>>, %arg8: memref<64x1xf32, #tpu.memory_space<vmem>>, %arg9: memref<64x32xf32, #tpu.memory_space<vmem>>) attributes {dimension_semantics = [#tpu.dimension_semantics<parallel>, #tpu.dimension_semantics<parallel>, #tpu.dimension_semantics<arbitrary>], iteration_bounds = array<i64: 8, 1, 1>, scalar_prefetch = 0 : i64, scratch_operands = 3 : i64, tpu.core_type = #tpu.core_type<tc>, window_params = [{transform_indices = @transform_0, window_bounds = array<i64: 1, 64, 32>}, {transform_indices = @transform_1, window_bounds = array<i64: 1, 64, 32>}, {transform_indices = @transform_2, window_bounds = array<i64: 1, 64, 32>}, {transform_indices = @transform_3, window_bounds = array<i64: 1, 64, 32>}]} {
    %c0_i32 = arith.constant 0 : i32
    %0 = arith.cmpi eq, %arg2, %c0_i32 : i32
    %1 = arith.extui %0 : i1 to i32
    %c0_i32_0 = arith.constant 0 : i32
    %2 = arith.cmpi ne, %1, %c0_i32_0 : i32
    scf.if %2 {
      %cst_26 = arith.constant -1.000000e+10 : f32
      %43 = vector.broadcast %cst_26 : f32 to vector<64x1xf32>
      %c0_27 = arith.constant 0 : index
      %c0_28 = arith.constant 0 : index
      %44 = vector.load %arg7[%c0_27, %c0_28] : memref<64x1xf32, #tpu.memory_space<vmem>>, vector<64x1xf32>
      tpu.vector_store %arg7[%c0_27, %c0_28], %43 {strides = array<i32>} : memref<64x1xf32, #tpu.memory_space<vmem>>, vector<64x1xf32>,
      %cst_29 = arith.constant 0.000000e+00 : f32
      %45 = vector.broadcast %cst_29 : f32 to vector<64x1xf32>
      %c0_30 = arith.constant 0 : index
      %c0_31 = arith.constant 0 : index
      %46 = vector.load %arg8[%c0_30, %c0_31] : memref<64x1xf32, #tpu.memory_space<vmem>>, vector<64x1xf32>
      tpu.vector_store %arg8[%c0_30, %c0_31], %45 {strides = array<i32>} : memref<64x1xf32, #tpu.memory_space<vmem>>, vector<64x1xf32>,
      %cst_32 = arith.constant 0.000000e+00 : f32
      %47 = vector.broadcast %cst_32 : f32 to vector<64x32xf32>
      %c0_33 = arith.constant 0 : index
      %c0_34 = arith.constant 0 : index
      %48 = vector.load %arg9[%c0_33, %c0_34] : memref<64x32xf32, #tpu.memory_space<vmem>>, vector<64x32xf32>
      tpu.vector_store %arg9[%c0_33, %c0_34], %47 {strides = array<i32>} : memref<64x32xf32, #tpu.memory_space<vmem>>, vector<64x32xf32>,
    } else {
    }
    %c0 = arith.constant 0 : index
    %c0_1 = arith.constant 0 : index
    %c0_2 = arith.constant 0 : index
    %3 = vector.load %arg3[%c0, %c0_1, %c0_2] : memref<1x64x32xf32, #tpu.memory_space<vmem>>, vector<1x64x32xf32>
    %4 = vector.shape_cast %3 : vector<1x64x32xf32> to vector<64x32xf32>
    %c64_i32 = arith.constant 64 : i32
    %5 = arith.muli %arg2, %c64_i32 : i32
    %6 = tpu.assume_multiple %5, 64 : i32
    %c0_3 = arith.constant 0 : index
    %7 = arith.index_cast %6 : i32 to index
    %c0_4 = arith.constant 0 : index
    %8 = vector.load %arg4[%c0_3, %7, %c0_4] : memref<1x64x32xf32, #tpu.memory_space<vmem>>, vector<1x64x32xf32>
    %9 = vector.shape_cast %8 : vector<1x64x32xf32> to vector<64x32xf32>
    %c0_5 = arith.constant 0 : index
    %10 = arith.index_cast %6 : i32 to index
    %c0_6 = arith.constant 0 : index
    %11 = vector.load %arg5[%c0_5, %10, %c0_6] : memref<1x64x32xf32, #tpu.memory_space<vmem>>, vector<1x64x32xf32>
    %12 = vector.shape_cast %11 : vector<1x64x32xf32> to vector<64x32xf32>
    %cst = arith.constant dense<0.000000e+00> : vector<64x64xf32>
    %13 = tpu.matmul %4, %9, %cst {dimension_numbers = #tpu.dot_dimension_numbers<[1], [1], [0], [0], [0, 0, 1, 0], [], []>} : vector<64x32xf32>, vector<64x32xf32>, vector<64x64xf32> -> vector<64x64xf32>
    %cst_7 = arith.constant 0.176776692 : f32
    %14 = vector.broadcast %cst_7 : f32 to vector<64x64xf32>
    %15 = arith.mulf %13, %14 : vector<64x64xf32>
    %c0_8 = arith.constant 0 : index
    %c0_9 = arith.constant 0 : index
    %16 = vector.load %arg7[%c0_8, %c0_9] : memref<64x1xf32, #tpu.memory_space<vmem>>, vector<64x1xf32>
    %cst_10 = arith.constant dense<0xFF800000> : vector<64xf32>
    %17 = vector.multi_reduction <maximumf>, %15, %cst_10 [1] : vector<64x64xf32> to vector<64xf32>
    %18 = vector.shape_cast %17 : vector<64xf32> to vector<64x1xf32>
    %19 = arith.maximumf %16, %18 : vector<64x1xf32>
    %20 = vector.broadcast %19 : vector<64x1xf32> to vector<64x64xf32>
    %21 = arith.subf %15, %20 : vector<64x64xf32>
    %22 = math.exp %21 : vector<64x64xf32>
    %23 = arith.subf %16, %19 : vector<64x1xf32>
    %24 = math.exp %23 : vector<64x1xf32>
    %cst_11 = arith.constant dense<0.000000e+00> : vector<64xf32>
    %25 = vector.multi_reduction <add>, %22, %cst_11 [1] : vector<64x64xf32> to vector<64xf32>
    %26 = vector.shape_cast %25 : vector<64xf32> to vector<64x1xf32>
    %cst_12 = arith.constant 1.000000e-10 : f32
    %27 = vector.broadcast %cst_12 : f32 to vector<64x1xf32>
    %28 = arith.addf %26, %27 : vector<64x1xf32>
    %cst_13 = arith.constant dense<0.000000e+00> : vector<64x32xf32>
    %29 = tpu.matmul %22, %12, %cst_13 {dimension_numbers = #tpu.dot_dimension_numbers<[1], [0], [0], [1], [0, 0, 1, 1], [], []>} : vector<64x64xf32>, vector<64x32xf32>, vector<64x32xf32> -> vector<64x32xf32>
    %c0_14 = arith.constant 0 : index
    %c0_15 = arith.constant 0 : index
    %30 = vector.load %arg8[%c0_14, %c0_15] : memref<64x1xf32, #tpu.memory_space<vmem>>, vector<64x1xf32>
    %31 = arith.mulf %24, %30 : vector<64x1xf32>
    %32 = arith.addf %31, %28 : vector<64x1xf32>
    %c0_16 = arith.constant 0 : index
    %c0_17 = arith.constant 0 : index
    %33 = vector.load %arg8[%c0_16, %c0_17] : memref<64x1xf32, #tpu.memory_space<vmem>>, vector<64x1xf32>
    tpu.vector_store %arg8[%c0_16, %c0_17], %32 {strides = array<i32>} : memref<64x1xf32, #tpu.memory_space<vmem>>, vector<64x1xf32>,
    %c0_18 = arith.constant 0 : index
    %c0_19 = arith.constant 0 : index
    %34 = vector.load %arg9[%c0_18, %c0_19] : memref<64x32xf32, #tpu.memory_space<vmem>>, vector<64x32xf32>
    %35 = vector.broadcast %24 : vector<64x1xf32> to vector<64x32xf32>
    %36 = arith.mulf %35, %34 : vector<64x32xf32>
    %37 = arith.addf %36, %29 : vector<64x32xf32>
    %c0_20 = arith.constant 0 : index
    %c0_21 = arith.constant 0 : index
    %38 = vector.load %arg9[%c0_20, %c0_21] : memref<64x32xf32, #tpu.memory_space<vmem>>, vector<64x32xf32>
    tpu.vector_store %arg9[%c0_20, %c0_21], %37 {strides = array<i32>} : memref<64x32xf32, #tpu.memory_space<vmem>>, vector<64x32xf32>,
    %c0_22 = arith.constant 0 : index
    %c0_23 = arith.constant 0 : index
    %39 = vector.load %arg7[%c0_22, %c0_23] : memref<64x1xf32, #tpu.memory_space<vmem>>, vector<64x1xf32>
    tpu.vector_store %arg7[%c0_22, %c0_23], %19 {strides = array<i32>} : memref<64x1xf32, #tpu.memory_space<vmem>>, vector<64x1xf32>,
    %c0_i32_24 = arith.constant 0 : i32
    %40 = arith.cmpi eq, %arg2, %c0_i32_24 : i32
    %41 = arith.extui %40 : i1 to i32
    %c0_i32_25 = arith.constant 0 : i32
    %42 = arith.cmpi ne, %41, %c0_i32_25 : i32
    scf.if %42 {
      %c0_26 = arith.constant 0 : index
      %c0_27 = arith.constant 0 : index
      %43 = vector.load %arg9[%c0_26, %c0_27] : memref<64x32xf32, #tpu.memory_space<vmem>>, vector<64x32xf32>
      %c0_28 = arith.constant 0 : index
      %c0_29 = arith.constant 0 : index
      %44 = vector.load %arg8[%c0_28, %c0_29] : memref<64x1xf32, #tpu.memory_space<vmem>>, vector<64x1xf32>
      %45 = vector.broadcast %44 : vector<64x1xf32> to vector<64x32xf32>
      %46 = arith.divf %43, %45 : vector<64x32xf32>
      %c0_30 = arith.constant 0 : index
      %c0_31 = arith.constant 0 : index
      %c0_32 = arith.constant 0 : index
      %47 = vector.load %arg6[%c0_30, %c0_31, %c0_32] : memref<1x64x32xf32, #tpu.memory_space<vmem>>, vector<1x64x32xf32>
      %48 = vector.shape_cast %47 : vector<1x64x32xf32> to vector<64x32xf32>
      %49 = vector.shape_cast %46 : vector<64x32xf32> to vector<1x64x32xf32>
      tpu.vector_store %arg6[%c0_30, %c0_31, %c0_32], %49 {strides = array<i32>} : memref<1x64x32xf32, #tpu.memory_space<vmem>>, vector<1x64x32xf32>,
    } else {
    }
    return
  }
  func.func @transform_0(%arg0: i32, %arg1: i32, %arg2: i32) -> (i32, i32, i32) {
    %c0_i32 = arith.constant 0 : i32
    %c0_i32_0 = arith.constant 0 : i32
    return %arg0, %arg1, %c0_i32 : i32, i32, i32
  }
  func.func @transform_1(%arg0: i32, %arg1: i32, %arg2: i32) -> (i32, i32, i32) {
    %c0_i32 = arith.constant 0 : i32
    %c0_i32_0 = arith.constant 0 : i32
    %c0_i32_1 = arith.constant 0 : i32
    return %arg0, %c0_i32, %c0_i32_0 : i32, i32, i32
  }
  func.func @transform_2(%arg0: i32, %arg1: i32, %arg2: i32) -> (i32, i32, i32) {
    %c0_i32 = arith.constant 0 : i32
    %c0_i32_0 = arith.constant 0 : i32
    %c0_i32_1 = arith.constant 0 : i32
    return %arg0, %c0_i32, %c0_i32_0 : i32, i32, i32
  }
  func.func @transform_3(%arg0: i32, %arg1: i32, %arg2: i32) -> (i32, i32, i32) {
    %c0_i32 = arith.constant 0 : i32
    %c0_i32_0 = arith.constant 0 : i32
    return %arg0, %arg1, %c0_i32 : i32, i32, i32
  }
}

</mosaic_0001>

<llo_original>
// kernel: tpu_custom_call.1
$region0: #{tpu_custom_call.1}
  #allocation0 [shape = 'u32[]', space=smem, size = 0x4, offset = 0x4, fixed_abs, tag = 'smem constant byte address 0x4 - core index']
  #allocation1 [shape = 'u32[72,128]{1,0:T(1,128)}', space=vmem, size = 0x9000, scoped, tag = 'internal scratch']
  #allocation2 [shape = 'f32[64,1]{1,0:T(8,128)}', space=vmem, size = 0x8000, scoped, tag = 'scratch operand']
  #allocation3 [shape = 'f32[64,1]{1,0:T(8,128)}', space=vmem, size = 0x8000, scoped, tag = 'scratch operand']
  #allocation4 [shape = 'f32[64,32]{1,0:T(8,128)}', space=vmem, size = 0x8000, scoped, tag = 'scratch operand']
  %s0 = inlined_call_operand.vmem [shape: f32[8,64,32], index: 0, kind: input, shape index: {}]
  %s1 = inlined_call_operand.vmem [shape: f32[8,64,32], index: 1, kind: input, shape index: {}]
  %s2 = inlined_call_operand.vmem [shape: f32[8,64,32], index: 2, kind: input, shape index: {}]
  %s3 = inlined_call_operand.vmem [shape: f32[8,64,32], index: 3, kind: output, shape index: {}]
  %s4 = sld [smem:[#allocation0]]
  $region53: #{tpu_custom_call.1} parent=0
    _
  %s6 = ssub.s32 1, %s4
  %s7 = scalar_select 0, %s6, %s4
  loop: start=0, step=1, limit=10
  $region2: #{tpu_custom_call.1} parent=0 // loop_pre_header
    _
  $region3: #{tpu_custom_call.1} parent=0 // loop_header
    %s9 = sphi 0, %s13
    %p10 = scmp.ge.s32.totalorder %s9, 10
    %s16 = sphi 0, %s35
    %s17 = sphi 0, %s31
    %s18 = sphi 0, %s27
    %s19 = sphi 0, %s16
    %s20 = sphi 0, %s17
    %s21 = sphi 0, %s18
    %s22 = sphi 0, %s19
    %s23 = sphi 0, %s20
    %s24 = sphi 0, %s21
    %s40 = sphi 0, %s42
    %s43 = sphi 0, %s40
    %s44 = sphi 0, %s43
    %s60 = sphi 0, %s44
    %s66 = sphi 0, %s68
    %s69 = sphi 0, %s66
    %s70 = sphi 0, %s69
    %s86 = sphi 0, %s70
    %s92 = sphi 0, %s94
    %s95 = sphi 0, %s92
    %s96 = sphi 0, %s95
    %s112 = sphi 0, %s96
    %s120 = sphi 0, %s122
    %s123 = sphi 0, %s120
    %s124 = sphi 0, %s123
    %s140 = sphi 0, %s124
  $region4: #{tpu_custom_call.1} parent=0 // loop_header_branch
    %12 = sbr.rel (%p10) target = $region8
  $region5: #{tpu_custom_call.1} parent=0 // loop_body
    %s14 = ssub.s32 %s9, 1
    %s15 = ssub.s32 %s9, 2
    %s25 = sadd.s32 1, %s18
    %p26 = scmp.ge.s32.totalorder %s25, 1
    %s27 = scalar_select %p26, 0, %s25
    %s28 = sadd.s32 1, %s17
    %s29 = scalar_select %p26, %s28, %s17
    %p30 = scmp.ge.s32.totalorder %s29, 1
    %s31 = scalar_select %p30, 0, %s29
    %s32 = sadd.s32 1, %s16
    %s33 = scalar_select %p30, %s32, %s16
    %p34 = scmp.ge.s32.totalorder %s33, 8
    %s35 = scalar_select %p34, 0, %s33
    %s36 = ssub.s32 %s16, %s35
    %s37 = ssub.s32 %s17, %s31
    %s38 = sor.u32 %s36, %s37
    %p39 = scmp.eq.s32.totalorder %s38, 0
    %s41 = sadd.s32 %s40, 1
    %s42 = scalar_select %p39, %s40, %s41
    %p45 = pneg %p39
    %p46 = scmp.eq.s32.totalorder %s9, 7
    %p47 = por %p45, %p46
    %p48 = scmp.ne.s32.totalorder %s40, %s43
    %p49 = scmp.eq.s32.totalorder %s9, 0
    %p50 = por %p48, %p49
    %p51 = scmp.ne.s32.totalorder %s40, %s43
    %p52 = scmp.eq.s32.totalorder %s14, 7
    %p53 = por %p51, %p52
    %p54 = scmp.ne.s32.totalorder %s43, %s44
    %p55 = scmp.eq.s32.totalorder %s14, 0
    %p56 = por %p54, %p55
    %p57 = scmp.ne.s32.totalorder %s43, %s44
    %p58 = scmp.eq.s32.totalorder %s15, 7
    %p59 = por %p57, %p58
    %p61 = scmp.ne.s32.totalorder %s44, %s60
    %p62 = scmp.eq.s32.totalorder %s15, 0
    %p63 = por %p61, %p62
    %s64 = ssub.s32 %s16, %s35
    %p65 = scmp.eq.s32.totalorder %s64, 0
    %s67 = sadd.s32 %s66, 1
    %s68 = scalar_select %p65, %s66, %s67
    %p71 = pneg %p65
    %p72 = scmp.eq.s32.totalorder %s9, 7
    %p73 = por %p71, %p72
    %p74 = scmp.ne.s32.totalorder %s66, %s69
    %p75 = scmp.eq.s32.totalorder %s9, 0
    %p76 = por %p74, %p75
    %p77 = scmp.ne.s32.totalorder %s66, %s69
    %p78 = scmp.eq.s32.totalorder %s14, 7
    %p79 = por %p77, %p78
    %p80 = scmp.ne.s32.totalorder %s69, %s70
    %p81 = scmp.eq.s32.totalorder %s14, 0
    %p82 = por %p80, %p81
    %p83 = scmp.ne.s32.totalorder %s69, %s70
    %p84 = scmp.eq.s32.totalorder %s15, 7
    %p85 = por %p83, %p84
    %p87 = scmp.ne.s32.totalorder %s70, %s86
    %p88 = scmp.eq.s32.totalorder %s15, 0
    %p89 = por %p87, %p88
    %s90 = ssub.s32 %s16, %s35
    %p91 = scmp.eq.s32.totalorder %s90, 0
    %s93 = sadd.s32 %s92, 1
    %s94 = scalar_select %p91, %s92, %s93
    %p97 = pneg %p91
    %p98 = scmp.eq.s32.totalorder %s9, 7
    %p99 = por %p97, %p98
    %p100 = scmp.ne.s32.totalorder %s92, %s95
    %p101 = scmp.eq.s32.totalorder %s9, 0
    %p102 = por %p100, %p101
    %p103 = scmp.ne.s32.totalorder %s92, %s95
    %p104 = scmp.eq.s32.totalorder %s14, 7
    %p105 = por %p103, %p104
    %p106 = scmp.ne.s32.totalorder %s95, %s96
    %p107 = scmp.eq.s32.totalorder %s14, 0
    %p108 = por %p106, %p107
    %p109 = scmp.ne.s32.totalorder %s95, %s96
    %p110 = scmp.eq.s32.totalorder %s15, 7
    %p111 = por %p109, %p110
    %p113 = scmp.ne.s32.totalorder %s96, %s112
    %p114 = scmp.eq.s32.totalorder %s15, 0
    %p115 = por %p113, %p114
    %s116 = ssub.s32 %s16, %s35
    %s117 = ssub.s32 %s17, %s31
    %s118 = sor.u32 %s116, %s117
    %p119 = scmp.eq.s32.totalorder %s118, 0
    %s121 = sadd.s32 %s120, 1
    %s122 = scalar_select %p119, %s120, %s121
    %p125 = pneg %p119
    %p126 = scmp.eq.s32.totalorder %s9, 7
    %p127 = por %p125, %p126
    %p128 = scmp.ne.s32.totalorder %s120, %s123
    %p129 = scmp.eq.s32.totalorder %s9, 0
    %p130 = por %p128, %p129
    %p131 = scmp.ne.s32.totalorder %s120, %s123
    %p132 = scmp.eq.s32.totalorder %s14, 7
    %p133 = por %p131, %p132
    %p134 = scmp.ne.s32.totalorder %s123, %s124
    %p135 = scmp.eq.s32.totalorder %s14, 0
    %p136 = por %p134, %p135
    %p137 = scmp.ne.s32.totalorder %s123, %s124
    %p138 = scmp.eq.s32.totalorder %s15, 7
    %p139 = por %p137, %p138
    %p141 = scmp.ne.s32.totalorder %s124, %s140
    %p142 = scmp.eq.s32.totalorder %s15, 0
    %p143 = por %p141, %p142
    %p144 = scmp.le.s32.totalorder 1, %s9
    %p145 = scmp.lt.s32.totalorder %s9, 9
    %p146 = pnand %p144, %p145
    %p147 = pneg %p146
    // Predicated region
    $region9: #{tpu_custom_call.1} parent=5 // pred_check
      _
    $region10: #{tpu_custom_call.1} parent=5 // pred_check_branch
      %149 = sbr.rel (%p146) target = $region12
    $region11: #{tpu_custom_call.1} parent=5 // pred_region
      %s150 = ssub.s32 %s9, 1
    $region12: #{tpu_custom_call.1} parent=5 // pred_fallthru
      _
    %p151 = scmp.lt.s32.totalorder %s9, 8
    // Predicated region
    $region13: #{tpu_custom_call.1} parent=5 // pred_check
      %p152 = pneg %p151
    $region14: #{tpu_custom_call.1} parent=5 // pred_check_branch
      %154 = sbr.rel (%p152) target = $region16
    $region15: #{tpu_custom_call.1} parent=5 // pred_region
      // Predicated region
      $region17: #{tpu_custom_call.1} parent=15 // pred_check
        %p155 = pneg %p50
      $region18: #{tpu_custom_call.1} parent=15 // pred_check_branch
        %157 = sbr.rel (%p155) target = $region20
      $region19: #{tpu_custom_call.1} parent=15 // pred_region
        %s158 = smul.u32 8, %s17
        %p159 = scmp.lt.s32.totalorder %s16, 7
        %s160 = scalar_select %p159, %s16, 7
        %p161 = scmp.lt.s32.totalorder %s158, 7
        %s162 = scalar_select %p161, %s158, 7
        %s163 = smul.addr %s160, 8
        %s164 = sadd.s32 %s162, %s163
        %s165 = smul.addr %s164, 8
        %s166 = scalar_lea.vmem %s0, %s165
        %s167 = smul.u32 8, %s17
      $region20: #{tpu_custom_call.1} parent=15 // pred_fallthru
        _
      // Predicated region
      $region21: #{tpu_custom_call.1} parent=15 // pred_check
        %p168 = pneg %p76
      $region22: #{tpu_custom_call.1} parent=15 // pred_check_branch
        %170 = sbr.rel (%p168) target = $region24
      $region23: #{tpu_custom_call.1} parent=15 // pred_region
        %p171 = scmp.lt.s32.totalorder %s16, 7
        %s172 = scalar_select %p171, %s16, 7
        %s173 = smul.addr %s172, 8
        %s174 = smul.addr %s173, 8
        %s175 = scalar_lea.vmem %s1, %s174
      $region24: #{tpu_custom_call.1} parent=15 // pred_fallthru
        _
      // Predicated region
      $region25: #{tpu_custom_call.1} parent=15 // pred_check
        %p176 = pneg %p102
      $region26: #{tpu_custom_call.1} parent=15 // pred_check_branch
        %178 = sbr.rel (%p176) target = $region28
      $region27: #{tpu_custom_call.1} parent=15 // pred_region
        %p179 = scmp.lt.s32.totalorder %s16, 7
        %s180 = scalar_select %p179, %s16, 7
        %s181 = smul.addr %s180, 8
        %s182 = smul.addr %s181, 8
        %s183 = scalar_lea.vmem %s2, %s182
      $region28: #{tpu_custom_call.1} parent=15 // pred_fallthru
        _
    $region16: #{tpu_custom_call.1} parent=5 // pred_fallthru
      _
    %p184 = scmp.le.s32.totalorder 1, %s9
    %p185 = scmp.lt.s32.totalorder %s9, 9
    %p186 = pnand %p184, %p185
    %p187 = pneg %p186
    // Predicated region
    $region29: #{tpu_custom_call.1} parent=5 // pred_check
      _
    $region30: #{tpu_custom_call.1} parent=5 // pred_check_branch
      %189 = sbr.rel (%p186) target = $region32
    $region31: #{tpu_custom_call.1} parent=5 // pred_region
      %s190 = ssub.s32 %s9, 1
      %s191 = smul.u32 8, %s20
      %p192 = scmp.lt.s32.totalorder %s19, 7
      %s193 = scalar_select %p192, %s19, 7
      %p194 = scmp.lt.s32.totalorder %s191, 7
      %s195 = scalar_select %p194, %s191, 7
      %s196 = smul.addr %s193, 8
      %s197 = sadd.s32 %s195, %s196
      %s198 = smul.addr %s197, 8
      %s199 = scalar_lea.vmem %s0, %s198
      %p200 = pneg %p56
      %p201 = pneg %p53
      %p202 = scmp.lt.s32.totalorder %s19, 7
      %s203 = scalar_select %p202, %s19, 7
      %s204 = smul.addr %s203, 8
      %s205 = smul.addr %s204, 8
      %s206 = scalar_lea.vmem %s1, %s205
      %p207 = pneg %p82
      %p208 = pneg %p79
      %p209 = scmp.lt.s32.totalorder %s19, 7
      %s210 = scalar_select %p209, %s19, 7
      %s211 = smul.addr %s210, 8
      %s212 = smul.addr %s211, 8
      %s213 = scalar_lea.vmem %s2, %s212
      %p214 = pneg %p108
      %p215 = pneg %p105
      %p216 = pneg %p136
      %p217 = pneg %p133
      %s218 = smul.u32 8, %s20
      %p219 = scmp.lt.s32.totalorder %s19, 7
      %s220 = scalar_select %p219, %s19, 7
      %p221 = scmp.lt.s32.totalorder %s218, 7
      %s222 = scalar_select %p221, %s218, 7
      %s223 = smul.addr %s220, 8
      %s224 = sadd.s32 %s222, %s223
      %s225 = smul.addr %s224, 8
      %s226 = scalar_lea.vmem %s3, %s225
      %s227 = smul.u32 8, %s20
      %p228 = scmp.lt.s32.totalorder %s19, 7
      %s229 = scalar_select %p228, %s19, 7
      %p230 = scmp.lt.s32.totalorder %s227, 7
      %s231 = scalar_select %p230, %s227, 7
      %s232 = smul.addr %s229, 8
      %s233 = sadd.s32 %s231, %s232
      %s234 = smul.addr %s233, 8
      %s235 = scalar_lea.vmem %s0, %s234
      %s236 = smul.u32 8, %s20
      %p237 = scmp.lt.s32.totalorder %s19, 7
      %s238 = scalar_select %p237, %s19, 7
      %s239 = smul.addr %s238, 8
      %s240 = smul.addr %s239, 8
      %s241 = scalar_lea.vmem %s1, %s240
      %p242 = scmp.lt.s32.totalorder %s19, 7
      %s243 = scalar_select %p242, %s19, 7
      %s244 = smul.addr %s243, 8
      %s245 = smul.addr %s244, 8
      %s246 = scalar_lea.vmem %s2, %s245
      %s247 = smul.u32 8, %s20
      %p248 = scmp.lt.s32.totalorder %s19, 7
      %s249 = scalar_select %p248, %s19, 7
      %p250 = scmp.lt.s32.totalorder %s247, 7
      %s251 = scalar_select %p250, %s247, 7
      %s252 = smul.addr %s249, 8
      %s253 = sadd.s32 %s251, %s252
      %s254 = smul.addr %s253, 8
      %s255 = scalar_lea.vmem %s3, %s254
      %s256 = smul.u32 8, %s20
      %p257 = scmp.eq.s32.totalorder %s21, 0
      // Predicated region
      $region33: #{tpu_custom_call.1} parent=31 // pred_check
        %p258 = pneg %p257
      $region34: #{tpu_custom_call.1} parent=31 // pred_check_branch
        %260 = sbr.rel (%p258) target = $region36
      $region35: #{tpu_custom_call.1} parent=31 // pred_region
        %vm261 = vcmask 7168
        %262 = vst.msk [vmem:[#allocation2] sm:$0xff] %vm261, -1e+10
        %263 = vst.msk [vmem:[#allocation2 + $0x8] sm:$0xff] %vm261, -1e+10
        %264 = vst.msk [vmem:[#allocation2 + $0x10] sm:$0xff] %vm261, -1e+10
        %265 = vst.msk [vmem:[#allocation2 + $0x18] sm:$0xff] %vm261, -1e+10
        %266 = vst.msk [vmem:[#allocation2 + $0x20] sm:$0xff] %vm261, -1e+10
        %267 = vst.msk [vmem:[#allocation2 + $0x28] sm:$0xff] %vm261, -1e+10
        %268 = vst.msk [vmem:[#allocation2 + $0x30] sm:$0xff] %vm261, -1e+10
        %269 = vst.msk [vmem:[#allocation2 + $0x38] sm:$0xff] %vm261, -1e+10
        %270 = vst.msk [vmem:[#allocation3] sm:$0xff] %vm261, 0.0
        %271 = vst.msk [vmem:[#allocation3 + $0x8] sm:$0xff] %vm261, 0.0
        %272 = vst.msk [vmem:[#allocation3 + $0x10] sm:$0xff] %vm261, 0.0
        %273 = vst.msk [vmem:[#allocation3 + $0x18] sm:$0xff] %vm261, 0.0
        %274 = vst.msk [vmem:[#allocation3 + $0x20] sm:$0xff] %vm261, 0.0
        %275 = vst.msk [vmem:[#allocation3 + $0x28] sm:$0xff] %vm261, 0.0
        %276 = vst.msk [vmem:[#allocation3 + $0x30] sm:$0xff] %vm261, 0.0
        %277 = vst.msk [vmem:[#allocation3 + $0x38] sm:$0xff] %vm261, 0.0
        %vm278 = vcmask 261120
        %279 = vst.msk [vmem:[#allocation4] sm:$0xff] %vm278, 0.0
        %280 = vst.msk [vmem:[#allocation4 + $0x8] sm:$0xff] %vm278, 0.0
        %281 = vst.msk [vmem:[#allocation4 + $0x10] sm:$0xff] %vm278, 0.0
        %282 = vst.msk [vmem:[#allocation4 + $0x18] sm:$0xff] %vm278, 0.0
        %283 = vst.msk [vmem:[#allocation4 + $0x20] sm:$0xff] %vm278, 0.0
        %284 = vst.msk [vmem:[#allocation4 + $0x28] sm:$0xff] %vm278, 0.0
        %285 = vst.msk [vmem:[#allocation4 + $0x30] sm:$0xff] %vm278, 0.0
        %286 = vst.msk [vmem:[#allocation4 + $0x38] sm:$0xff] %vm278, 0.0
      $region36: #{tpu_custom_call.1} parent=31 // pred_fallthru
        _
      %v287 = vld [vmem:[%s235] sm:$0xff]
      %v288 = vld [vmem:[%s235 + $0x8] sm:$0xff]
      %v289 = vld [vmem:[%s235 + $0x10] sm:$0xff]
      %v290 = vld [vmem:[%s235 + $0x18] sm:$0xff]
      %v291 = vld [vmem:[%s235 + $0x20] sm:$0xff]
      %v292 = vld [vmem:[%s235 + $0x28] sm:$0xff]
      %v293 = vld [vmem:[%s235 + $0x30] sm:$0xff]
      %v294 = vld [vmem:[%s235 + $0x38] sm:$0xff]
      %s295 = smul.u32 %s21, 64
      %s296 = scalar_lea.vmem %s241, %s295
      %v297 = vld [vmem:[%s296] sm:$0xff]
      %v298 = vld [vmem:[%s296 + $0x8] sm:$0xff]
      %v299 = vld [vmem:[%s296 + $0x10] sm:$0xff]
      %v300 = vld [vmem:[%s296 + $0x18] sm:$0xff]
      %v301 = vld [vmem:[%s296 + $0x20] sm:$0xff]
      %v302 = vld [vmem:[%s296 + $0x28] sm:$0xff]
      %v303 = vld [vmem:[%s296 + $0x30] sm:$0xff]
      %v304 = vld [vmem:[%s296 + $0x38] sm:$0xff]
      %s305 = scalar_lea.vmem %s246, %s295
      %v306 = vld [vmem:[%s305] sm:$0xff]
      %v307 = vld [vmem:[%s305 + $0x8] sm:$0xff]
      %v308 = vld [vmem:[%s305 + $0x10] sm:$0xff]
      %v309 = vld [vmem:[%s305 + $0x18] sm:$0xff]
      %v310 = vld [vmem:[%s305 + $0x20] sm:$0xff]
      %v311 = vld [vmem:[%s305 + $0x28] sm:$0xff]
      %v312 = vld [vmem:[%s305 + $0x30] sm:$0xff]
      %v313 = vld [vmem:[%s305 + $0x38] sm:$0xff]
      %vm314 = vcmask 261120
      %v316 = vsel %vm314, %v287, 0
      %v319 = vsel %vm314, %v288, 0
      %v322 = vsel %vm314, %v289, 0
      %v325 = vsel %vm314, %v290, 0
      %v328 = vsel %vm314, %v291, 0
      %v331 = vsel %vm314, %v292, 0
      %v334 = vsel %vm314, %v293, 0
      %v337 = vsel %vm314, %v294, 0
      %v340 = vsel %vm314, %v297, 0
      %v343 = vsel %vm314, %v298, 0
      %v346 = vsel %vm314, %v299, 0
      %v349 = vsel %vm314, %v300, 0
      %v352 = vsel %vm314, %v301, 0
      %v355 = vsel %vm314, %v302, 0
      %v358 = vsel %vm314, %v303, 0
      %v361 = vsel %vm314, %v304, 0
      %363 = vmatpush.xpose.msra.mxu0 0.0
      %364 = vmatpush.xpose.msra.mxu0 0.0
      %365 = vmatpush.xpose.msra.mxu0 0.0
      %366 = vmatpush.xpose.msra.mxu0 0.0
      %367 = vmatpush.xpose.msra.mxu0 0.0
      %368 = vmatpush.xpose.msra.mxu0 0.0
      %369 = vmatpush.xpose.msra.mxu0 0.0
      %370 = vmatpush.xpose.msra.mxu0 0.0
      %371 = vmatpush.xpose.msra.mxu0 %v361
      %372 = vmatpush.xpose.msra.mxu0 %v358
      %373 = vmatpush.xpose.msra.mxu0 %v355
      %374 = vmatpush.xpose.msra.mxu0 %v352
      %375 = vmatpush.xpose.msra.mxu0 %v349
      %376 = vmatpush.xpose.msra.mxu0 %v346
      %377 = vmatpush.xpose.msra.mxu0 %v343
      %378 = vmatpush.xpose.msra.mxu0 %v340
      %379 = vmatmul.f32.gmra.mxu0 %v316
      %v380 = vpop.f32.mrf.mxu0
      %v381 = vadd.f32 0.0, %v380
      %382 = vmatmul.f32.gmra.mxu0 %v319
      %v383 = vpop.f32.mrf.mxu0
      %v384 = vadd.f32 0.0, %v383
      %385 = vmatmul.f32.gmra.mxu0 %v322
      %v386 = vpop.f32.mrf.mxu0
      %v387 = vadd.f32 0.0, %v386
      %388 = vmatmul.f32.gmra.mxu0 %v325
      %v389 = vpop.f32.mrf.mxu0
      %v390 = vadd.f32 0.0, %v389
      %391 = vmatmul.f32.gmra.mxu0 %v328
      %v392 = vpop.f32.mrf.mxu0
      %v393 = vadd.f32 0.0, %v392
      %394 = vmatmul.f32.gmra.mxu0 %v331
      %v395 = vpop.f32.mrf.mxu0
      %v396 = vadd.f32 0.0, %v395
      %397 = vmatmul.f32.gmra.mxu0 %v334
      %v398 = vpop.f32.mrf.mxu0
      %v399 = vadd.f32 0.0, %v398
      %400 = vmatmul.f32.gmra.mxu0 %v337
      %v401 = vpop.f32.mrf.mxu0
      %v402 = vadd.f32 0.0, %v401
      %403 = vdwg.mxu0
      %v404 = vmul.f32 %v381, 0.17677669
      %v405 = vmul.f32 %v384, 0.17677669
      %v406 = vmul.f32 %v387, 0.17677669
      %v407 = vmul.f32 %v390, 0.17677669
      %v408 = vmul.f32 %v393, 0.17677669
      %v409 = vmul.f32 %v396, 0.17677669
      %v410 = vmul.f32 %v399, 0.17677669
      %v411 = vmul.f32 %v402, 0.17677669
      %v412 = vld [vmem:[#allocation2] sm:$0xff]
      %v413 = vld [vmem:[#allocation2 + $0x8] sm:$0xff]
      %v414 = vld [vmem:[#allocation2 + $0x10] sm:$0xff]
      %v415 = vld [vmem:[#allocation2 + $0x18] sm:$0xff]
      %v416 = vld [vmem:[#allocation2 + $0x20] sm:$0xff]
      %v417 = vld [vmem:[#allocation2 + $0x28] sm:$0xff]
      %v418 = vld [vmem:[#allocation2 + $0x30] sm:$0xff]
      %v419 = vld [vmem:[#allocation2 + $0x38] sm:$0xff]
      %vm420 = vcmask 523264
      %v421 = vsel %vm420, %v404, -inf
      %422 = vmax.xlane.f32.xlu0 %v421
      %v423 = vpop.xlane.xlu0 %422
      %v424 = vsel %vm420, %v405, -inf
      %425 = vmax.xlane.f32.xlu0 %v424
      %v426 = vpop.xlane.xlu0 %425
      %v427 = vsel %vm420, %v406, -inf
      %428 = vmax.xlane.f32.xlu0 %v427
      %v429 = vpop.xlane.xlu0 %428
      %v430 = vsel %vm420, %v407, -inf
      %431 = vmax.xlane.f32.xlu0 %v430
      %v432 = vpop.xlane.xlu0 %431
      %v433 = vsel %vm420, %v408, -inf
      %434 = vmax.xlane.f32.xlu0 %v433
      %v435 = vpop.xlane.xlu0 %434
      %v436 = vsel %vm420, %v409, -inf
      %437 = vmax.xlane.f32.xlu0 %v436
      %v438 = vpop.xlane.xlu0 %437
      %v439 = vsel %vm420, %v410, -inf
      %440 = vmax.xlane.f32.xlu0 %v439
      %v441 = vpop.xlane.xlu0 %440
      %v442 = vsel %vm420, %v411, -inf
      %443 = vmax.xlane.f32.xlu0 %v442
      %v444 = vpop.xlane.xlu0 %443
      %v445 = vmax.f32 %v412, %v423
      %v446 = vmax.f32 %v413, %v426
      %v447 = vmax.f32 %v414, %v429
      %v448 = vmax.f32 %v415, %v432
      %v449 = vmax.f32 %v416, %v435
      %v450 = vmax.f32 %v417, %v438
      %v451 = vmax.f32 %v418, %v441
      %v452 = vmax.f32 %v419, %v444
      %454 = vset.pattern.permute.xlu0 0
      %455 = vperm.xlu0 %454, %v445
      %v456 = vpop.permute.xlu0 %455
      %459 = vset.pattern.permute.xlu0 0
      %460 = vperm.xlu0 %459, %v446
      %v461 = vpop.permute.xlu0 %460
      %464 = vset.pattern.permute.xlu0 0
      %465 = vperm.xlu0 %464, %v447
      %v466 = vpop.permute.xlu0 %465
      %469 = vset.pattern.permute.xlu0 0
      %470 = vperm.xlu0 %469, %v448
      %v471 = vpop.permute.xlu0 %470
      %474 = vset.pattern.permute.xlu0 0
      %475 = vperm.xlu0 %474, %v449
      %v476 = vpop.permute.xlu0 %475
      %479 = vset.pattern.permute.xlu0 0
      %480 = vperm.xlu0 %479, %v450
      %v481 = vpop.permute.xlu0 %480
      %484 = vset.pattern.permute.xlu0 0
      %485 = vperm.xlu0 %484, %v451
      %v486 = vpop.permute.xlu0 %485
      %489 = vset.pattern.permute.xlu0 0
      %490 = vperm.xlu0 %489, %v452
      %v491 = vpop.permute.xlu0 %490
      %v493 = vsub.f32 %v404, %v456
      %v494 = vsub.f32 %v405, %v461
      %v495 = vsub.f32 %v406, %v466
      %v496 = vsub.f32 %v407, %v471
      %v497 = vsub.f32 %v408, %v476
      %v498 = vsub.f32 %v409, %v481
      %v499 = vsub.f32 %v410, %v486
      %v500 = vsub.f32 %v411, %v491
      %v501 = vmul.f32 %v493, 1.442695
      %v502 = vpow.pop %v501
      %v503 = vmul.f32 %v494, 1.442695
      %v504 = vpow.pop %v503
      %v505 = vmul.f32 %v495, 1.442695
      %v506 = vpow.pop %v505
      %v507 = vmul.f32 %v496, 1.442695
      %v508 = vpow.pop %v507
      %v509 = vmul.f32 %v497, 1.442695
      %v510 = vpow.pop %v509
      %v511 = vmul.f32 %v498, 1.442695
      %v512 = vpow.pop %v511
      %v513 = vmul.f32 %v499, 1.442695
      %v514 = vpow.pop %v513
      %v515 = vmul.f32 %v500, 1.442695
      %v516 = vpow.pop %v515
      %v517 = vsub.f32 %v412, %v445
      %v518 = vsub.f32 %v413, %v446
      %v519 = vsub.f32 %v414, %v447
      %v520 = vsub.f32 %v415, %v448
      %v521 = vsub.f32 %v416, %v449
      %v522 = vsub.f32 %v417, %v450
      %v523 = vsub.f32 %v418, %v451
      %v524 = vsub.f32 %v419, %v452
      %v525 = vmul.f32 %v517, 1.442695
      %v526 = vpow.pop %v525
      %v527 = vmul.f32 %v518, 1.442695
      %v528 = vpow.pop %v527
      %v529 = vmul.f32 %v519, 1.442695
      %v530 = vpow.pop %v529
      %v531 = vmul.f32 %v520, 1.442695
      %v532 = vpow.pop %v531
      %v533 = vmul.f32 %v521, 1.442695
      %v534 = vpow.pop %v533
      %v535 = vmul.f32 %v522, 1.442695
      %v536 = vpow.pop %v535
      %v537 = vmul.f32 %v523, 1.442695
      %v538 = vpow.pop %v537
      %v539 = vmul.f32 %v524, 1.442695
      %v540 = vpow.pop %v539
      %v541 = vsel %vm420, %v502, 0.0
      %542 = vadd.xlane.f32.xlu0 %v541
      %v543 = vpop.xlane.xlu0 %542
      %v544 = vsel %vm420, %v504, 0.0
      %545 = vadd.xlane.f32.xlu0 %v544
      %v546 = vpop.xlane.xlu0 %545
      %v547 = vsel %vm420, %v506, 0.0
      %548 = vadd.xlane.f32.xlu0 %v547
      %v549 = vpop.xlane.xlu0 %548
      %v550 = vsel %vm420, %v508, 0.0
      %551 = vadd.xlane.f32.xlu0 %v550
      %v552 = vpop.xlane.xlu0 %551
      %v553 = vsel %vm420, %v510, 0.0
      %554 = vadd.xlane.f32.xlu0 %v553
      %v555 = vpop.xlane.xlu0 %554
      %v556 = vsel %vm420, %v512, 0.0
      %557 = vadd.xlane.f32.xlu0 %v556
      %v558 = vpop.xlane.xlu0 %557
      %v559 = vsel %vm420, %v514, 0.0
      %560 = vadd.xlane.f32.xlu0 %v559
      %v561 = vpop.xlane.xlu0 %560
      %v562 = vsel %vm420, %v516, 0.0
      %563 = vadd.xlane.f32.xlu0 %v562
      %v564 = vpop.xlane.xlu0 %563
      %v565 = vadd.f32 %v543, 1e-10
      %v566 = vadd.f32 %v546, 1e-10
      %v567 = vadd.f32 %v549, 1e-10
      %v568 = vadd.f32 %v552, 1e-10
      %v569 = vadd.f32 %v555, 1e-10
      %v570 = vadd.f32 %v558, 1e-10
      %v571 = vadd.f32 %v561, 1e-10
      %v572 = vadd.f32 %v564, 1e-10
      %v574 = vsel %vm420, %v502, 0
      %v577 = vsel %vm420, %v504, 0
      %v580 = vsel %vm420, %v506, 0
      %v583 = vsel %vm420, %v508, 0
      %v586 = vsel %vm420, %v510, 0
      %v589 = vsel %vm420, %v512, 0
      %v592 = vsel %vm420, %v514, 0
      %v595 = vsel %vm420, %v516, 0
      %597 = vmatpush.msra.mxu0 0.0
      %598 = vmatpush.msra.mxu0 0.0
      %599 = vmatpush.msra.mxu0 0.0
      %600 = vmatpush.msra.mxu0 0.0
      %601 = vmatpush.msra.mxu0 0.0
      %602 = vmatpush.msra.mxu0 0.0
      %603 = vmatpush.msra.mxu0 0.0
      %604 = vmatpush.msra.mxu0 0.0
      %605 = vmatpush.msra.mxu0 %v313
      %606 = vmatpush.msra.mxu0 %v312
      %607 = vmatpush.msra.mxu0 %v311
      %608 = vmatpush.msra.mxu0 %v310
      %609 = vmatpush.msra.mxu0 %v309
      %610 = vmatpush.msra.mxu0 %v308
      %611 = vmatpush.msra.mxu0 %v307
      %612 = vmatpush.msra.mxu0 %v306
      %613 = vmatmul.f32.gmra.mxu0 %v574
      %v614 = vpop.f32.mrf.mxu0
      %v615 = vadd.f32 0.0, %v614
      %616 = vmatmul.f32.gmra.mxu0 %v577
      %v617 = vpop.f32.mrf.mxu0
      %v618 = vadd.f32 0.0, %v617
      %619 = vmatmul.f32.gmra.mxu0 %v580
      %v620 = vpop.f32.mrf.mxu0
      %v621 = vadd.f32 0.0, %v620
      %622 = vmatmul.f32.gmra.mxu0 %v583
      %v623 = vpop.f32.mrf.mxu0
      %v624 = vadd.f32 0.0, %v623
      %625 = vmatmul.f32.gmra.mxu0 %v586
      %v626 = vpop.f32.mrf.mxu0
      %v627 = vadd.f32 0.0, %v626
      %628 = vmatmul.f32.gmra.mxu0 %v589
      %v629 = vpop.f32.mrf.mxu0
      %v630 = vadd.f32 0.0, %v629
      %631 = vmatmul.f32.gmra.mxu0 %v592
      %v632 = vpop.f32.mrf.mxu0
      %v633 = vadd.f32 0.0, %v632
      %634 = vmatmul.f32.gmra.mxu0 %v595
      %v635 = vpop.f32.mrf.mxu0
      %v636 = vadd.f32 0.0, %v635
      %637 = vdwg.mxu0
      %v638 = vld [vmem:[#allocation3] sm:$0xff]
      %v639 = vld [vmem:[#allocation3 + $0x8] sm:$0xff]
      %v640 = vld [vmem:[#allocation3 + $0x10] sm:$0xff]
      %v641 = vld [vmem:[#allocation3 + $0x18] sm:$0xff]
      %v642 = vld [vmem:[#allocation3 + $0x20] sm:$0xff]
      %v643 = vld [vmem:[#allocation3 + $0x28] sm:$0xff]
      %v644 = vld [vmem:[#allocation3 + $0x30] sm:$0xff]
      %v645 = vld [vmem:[#allocation3 + $0x38] sm:$0xff]
      %v646 = vmul.f32 %v526, %v638
      %v647 = vmul.f32 %v528, %v639
      %v648 = vmul.f32 %v530, %v640
      %v649 = vmul.f32 %v532, %v641
      %v650 = vmul.f32 %v534, %v642
      %v651 = vmul.f32 %v536, %v643
      %v652 = vmul.f32 %v538, %v644
      %v653 = vmul.f32 %v540, %v645
      %v654 = vadd.f32 %v646, %v565
      %v655 = vadd.f32 %v647, %v566
      %v656 = vadd.f32 %v648, %v567
      %v657 = vadd.f32 %v649, %v568
      %v658 = vadd.f32 %v650, %v569
      %v659 = vadd.f32 %v651, %v570
      %v660 = vadd.f32 %v652, %v571
      %v661 = vadd.f32 %v653, %v572
      %vm662 = vcmask 7168
      %663 = vst.msk [vmem:[#allocation3] sm:$0xff] %vm662, %v654
      %664 = vst.msk [vmem:[#allocation3 + $0x8] sm:$0xff] %vm662, %v655
      %665 = vst.msk [vmem:[#allocation3 + $0x10] sm:$0xff] %vm662, %v656
      %666 = vst.msk [vmem:[#allocation3 + $0x18] sm:$0xff] %vm662, %v657
      %667 = vst.msk [vmem:[#allocation3 + $0x20] sm:$0xff] %vm662, %v658
      %668 = vst.msk [vmem:[#allocation3 + $0x28] sm:$0xff] %vm662, %v659
      %669 = vst.msk [vmem:[#allocation3 + $0x30] sm:$0xff] %vm662, %v660
      %670 = vst.msk [vmem:[#allocation3 + $0x38] sm:$0xff] %vm662, %v661
      %v671 = vld [vmem:[#allocation4] sm:$0xff]
      %v672 = vld [vmem:[#allocation4 + $0x8] sm:$0xff]
      %v673 = vld [vmem:[#allocation4 + $0x10] sm:$0xff]
      %v674 = vld [vmem:[#allocation4 + $0x18] sm:$0xff]
      %v675 = vld [vmem:[#allocation4 + $0x20] sm:$0xff]
      %v676 = vld [vmem:[#allocation4 + $0x28] sm:$0xff]
      %v677 = vld [vmem:[#allocation4 + $0x30] sm:$0xff]
      %v678 = vld [vmem:[#allocation4 + $0x38] sm:$0xff]
      %680 = vset.pattern.permute.xlu0 0
      %681 = vperm.xlu0 %680, %v526
      %v682 = vpop.permute.xlu0 %681
      %685 = vset.pattern.permute.xlu0 0
      %686 = vperm.xlu0 %685, %v528
      %v687 = vpop.permute.xlu0 %686
      %690 = vset.pattern.permute.xlu0 0
      %691 = vperm.xlu0 %690, %v530
      %v692 = vpop.permute.xlu0 %691
      %695 = vset.pattern.permute.xlu0 0
      %696 = vperm.xlu0 %695, %v532
      %v697 = vpop.permute.xlu0 %696
      %700 = vset.pattern.permute.xlu0 0
      %701 = vperm.xlu0 %700, %v534
      %v702 = vpop.permute.xlu0 %701
      %705 = vset.pattern.permute.xlu0 0
      %706 = vperm.xlu0 %705, %v536
      %v707 = vpop.permute.xlu0 %706
      %710 = vset.pattern.permute.xlu0 0
      %711 = vperm.xlu0 %710, %v538
      %v712 = vpop.permute.xlu0 %711
      %715 = vset.pattern.permute.xlu0 0
      %716 = vperm.xlu0 %715, %v540
      %v717 = vpop.permute.xlu0 %716
      %v719 = vmul.f32 %v682, %v671
      %v720 = vmul.f32 %v687, %v672
      %v721 = vmul.f32 %v692, %v673
      %v722 = vmul.f32 %v697, %v674
      %v723 = vmul.f32 %v702, %v675
      %v724 = vmul.f32 %v707, %v676
      %v725 = vmul.f32 %v712, %v677
      %v726 = vmul.f32 %v717, %v678
      %v727 = vadd.f32 %v719, %v615
      %v728 = vadd.f32 %v720, %v618
      %v729 = vadd.f32 %v721, %v621
      %v730 = vadd.f32 %v722, %v624
      %v731 = vadd.f32 %v723, %v627
      %v732 = vadd.f32 %v724, %v630
      %v733 = vadd.f32 %v725, %v633
      %v734 = vadd.f32 %v726, %v636
      %735 = vst.msk [vmem:[#allocation4] sm:$0xff] %vm314, %v727
      %736 = vst.msk [vmem:[#allocation4 + $0x8] sm:$0xff] %vm314, %v728
      %737 = vst.msk [vmem:[#allocation4 + $0x10] sm:$0xff] %vm314, %v729
      %738 = vst.msk [vmem:[#allocation4 + $0x18] sm:$0xff] %vm314, %v730
      %739 = vst.msk [vmem:[#allocation4 + $0x20] sm:$0xff] %vm314, %v731
      %740 = vst.msk [vmem:[#allocation4 + $0x28] sm:$0xff] %vm314, %v732
      %741 = vst.msk [vmem:[#allocation4 + $0x30] sm:$0xff] %vm314, %v733
      %742 = vst.msk [vmem:[#allocation4 + $0x38] sm:$0xff] %vm314, %v734
      %743 = vst.msk [vmem:[#allocation2] sm:$0xff] %vm662, %v445
      %744 = vst.msk [vmem:[#allocation2 + $0x8] sm:$0xff] %vm662, %v446
      %745 = vst.msk [vmem:[#allocation2 + $0x10] sm:$0xff] %vm662, %v447
      %746 = vst.msk [vmem:[#allocation2 + $0x18] sm:$0xff] %vm662, %v448
      %747 = vst.msk [vmem:[#allocation2 + $0x20] sm:$0xff] %vm662, %v449
      %748 = vst.msk [vmem:[#allocation2 + $0x28] sm:$0xff] %vm662, %v450
      %749 = vst.msk [vmem:[#allocation2 + $0x30] sm:$0xff] %vm662, %v451
      %750 = vst.msk [vmem:[#allocation2 + $0x38] sm:$0xff] %vm662, %v452
      // Predicated region
      $region37: #{tpu_custom_call.1} parent=31 // pred_check
        %p751 = pneg %p257
      $region38: #{tpu_custom_call.1} parent=31 // pred_check_branch
        %753 = sbr.rel (%p751) target = $region40
      $region39: #{tpu_custom_call.1} parent=31 // pred_region
        %v754 = vld [vmem:[#allocation4] sm:$0xff]
        %v755 = vld [vmem:[#allocation4 + $0x8] sm:$0xff]
        %v756 = vld [vmem:[#allocation4 + $0x10] sm:$0xff]
        %v757 = vld [vmem:[#allocation4 + $0x18] sm:$0xff]
        %v758 = vld [vmem:[#allocation4 + $0x20] sm:$0xff]
        %v759 = vld [vmem:[#allocation4 + $0x28] sm:$0xff]
        %v760 = vld [vmem:[#allocation4 + $0x30] sm:$0xff]
        %v761 = vld [vmem:[#allocation4 + $0x38] sm:$0xff]
        %v762 = vld [vmem:[#allocation3] sm:$0xff]
        %v763 = vld [vmem:[#allocation3 + $0x8] sm:$0xff]
        %v764 = vld [vmem:[#allocation3 + $0x10] sm:$0xff]
        %v765 = vld [vmem:[#allocation3 + $0x18] sm:$0xff]
        %v766 = vld [vmem:[#allocation3 + $0x20] sm:$0xff]
        %v767 = vld [vmem:[#allocation3 + $0x28] sm:$0xff]
        %v768 = vld [vmem:[#allocation3 + $0x30] sm:$0xff]
        %v769 = vld [vmem:[#allocation3 + $0x38] sm:$0xff]
        %771 = vset.pattern.permute.xlu0 0
        %772 = vperm.xlu0 %771, %v762
        %v773 = vpop.permute.xlu0 %772
        %776 = vset.pattern.permute.xlu0 0
        %777 = vperm.xlu0 %776, %v763
        %v778 = vpop.permute.xlu0 %777
        %781 = vset.pattern.permute.xlu0 0
        %782 = vperm.xlu0 %781, %v764
        %v783 = vpop.permute.xlu0 %782
        %786 = vset.pattern.permute.xlu0 0
        %787 = vperm.xlu0 %786, %v765
        %v788 = vpop.permute.xlu0 %787
        %791 = vset.pattern.permute.xlu0 0
        %792 = vperm.xlu0 %791, %v766
        %v793 = vpop.permute.xlu0 %792
        %796 = vset.pattern.permute.xlu0 0
        %797 = vperm.xlu0 %796, %v767
        %v798 = vpop.permute.xlu0 %797
        %801 = vset.pattern.permute.xlu0 0
        %802 = vperm.xlu0 %801, %v768
        %v803 = vpop.permute.xlu0 %802
        %806 = vset.pattern.permute.xlu0 0
        %807 = vperm.xlu0 %806, %v769
        %v808 = vpop.permute.xlu0 %807
        %v810 = vrcp.pop %v773
        %v811 = vmul.f32 %v773, %v810
        %v812 = vsub.f32 1.0, %v811
        %v813 = vmul.f32 %v810, %v812
        %v814 = vadd.f32 %v810, %v813
        %vm815 = vweird.f32 %v773
        %vm816 = vweird.f32 %v810
        %vm817 = vmor %vm815, %vm816
        %v818 = vsel %vm817, %v810, %v814
        %v819 = vand.u32 2147483647, %v773
        %vm820 = vcmp.eq.f32.partialorder %v819, 8.507059e+37
        %v821 = vand.u32 %v773, 2147483648
        %v822 = vor.u32 1.1754944e-38, %v821
        %v823 = vsel %vm820, %v822, %v818
        %v824 = vmul.f32 %v754, %v823
        %v825 = vrcp.pop %v778
        %v826 = vmul.f32 %v778, %v825
        %v827 = vsub.f32 1.0, %v826
        %v828 = vmul.f32 %v825, %v827
        %v829 = vadd.f32 %v825, %v828
        %vm830 = vweird.f32 %v778
        %vm831 = vweird.f32 %v825
        %vm832 = vmor %vm830, %vm831
        %v833 = vsel %vm832, %v825, %v829
        %v834 = vand.u32 2147483647, %v778
        %vm835 = vcmp.eq.f32.partialorder %v834, 8.507059e+37
        %v836 = vand.u32 %v778, 2147483648
        %v837 = vor.u32 1.1754944e-38, %v836
        %v838 = vsel %vm835, %v837, %v833
        %v839 = vmul.f32 %v755, %v838
        %v840 = vrcp.pop %v783
        %v841 = vmul.f32 %v783, %v840
        %v842 = vsub.f32 1.0, %v841
        %v843 = vmul.f32 %v840, %v842
        %v844 = vadd.f32 %v840, %v843
        %vm845 = vweird.f32 %v783
        %vm846 = vweird.f32 %v840
        %vm847 = vmor %vm845, %vm846
        %v848 = vsel %vm847, %v840, %v844
        %v849 = vand.u32 2147483647, %v783
        %vm850 = vcmp.eq.f32.partialorder %v849, 8.507059e+37
        %v851 = vand.u32 %v783, 2147483648
        %v852 = vor.u32 1.1754944e-38, %v851
        %v853 = vsel %vm850, %v852, %v848
        %v854 = vmul.f32 %v756, %v853
        %v855 = vrcp.pop %v788
        %v856 = vmul.f32 %v788, %v855
        %v857 = vsub.f32 1.0, %v856
        %v858 = vmul.f32 %v855, %v857
        %v859 = vadd.f32 %v855, %v858
        %vm860 = vweird.f32 %v788
        %vm861 = vweird.f32 %v855
        %vm862 = vmor %vm860, %vm861
        %v863 = vsel %vm862, %v855, %v859
        %v864 = vand.u32 2147483647, %v788
        %vm865 = vcmp.eq.f32.partialorder %v864, 8.507059e+37
        %v866 = vand.u32 %v788, 2147483648
        %v867 = vor.u32 1.1754944e-38, %v866
        %v868 = vsel %vm865, %v867, %v863
        %v869 = vmul.f32 %v757, %v868
        %v870 = vrcp.pop %v793
        %v871 = vmul.f32 %v793, %v870
        %v872 = vsub.f32 1.0, %v871
        %v873 = vmul.f32 %v870, %v872
        %v874 = vadd.f32 %v870, %v873
        %vm875 = vweird.f32 %v793
        %vm876 = vweird.f32 %v870
        %vm877 = vmor %vm875, %vm876
        %v878 = vsel %vm877, %v870, %v874
        %v879 = vand.u32 2147483647, %v793
        %vm880 = vcmp.eq.f32.partialorder %v879, 8.507059e+37
        %v881 = vand.u32 %v793, 2147483648
        %v882 = vor.u32 1.1754944e-38, %v881
        %v883 = vsel %vm880, %v882, %v878
        %v884 = vmul.f32 %v758, %v883
        %v885 = vrcp.pop %v798
        %v886 = vmul.f32 %v798, %v885
        %v887 = vsub.f32 1.0, %v886
        %v888 = vmul.f32 %v885, %v887
        %v889 = vadd.f32 %v885, %v888
        %vm890 = vweird.f32 %v798
        %vm891 = vweird.f32 %v885
        %vm892 = vmor %vm890, %vm891
        %v893 = vsel %vm892, %v885, %v889
        %v894 = vand.u32 2147483647, %v798
        %vm895 = vcmp.eq.f32.partialorder %v894, 8.507059e+37
        %v896 = vand.u32 %v798, 2147483648
        %v897 = vor.u32 1.1754944e-38, %v896
        %v898 = vsel %vm895, %v897, %v893
        %v899 = vmul.f32 %v759, %v898
        %v900 = vrcp.pop %v803
        %v901 = vmul.f32 %v803, %v900
        %v902 = vsub.f32 1.0, %v901
        %v903 = vmul.f32 %v900, %v902
        %v904 = vadd.f32 %v900, %v903
        %vm905 = vweird.f32 %v803
        %vm906 = vweird.f32 %v900
        %vm907 = vmor %vm905, %vm906
        %v908 = vsel %vm907, %v900, %v904
        %v909 = vand.u32 2147483647, %v803
        %vm910 = vcmp.eq.f32.partialorder %v909, 8.507059e+37
        %v911 = vand.u32 %v803, 2147483648
        %v912 = vor.u32 1.1754944e-38, %v911
        %v913 = vsel %vm910, %v912, %v908
        %v914 = vmul.f32 %v760, %v913
        %v915 = vrcp.pop %v808
        %v916 = vmul.f32 %v808, %v915
        %v917 = vsub.f32 1.0, %v916
        %v918 = vmul.f32 %v915, %v917
        %v919 = vadd.f32 %v915, %v918
        %vm920 = vweird.f32 %v808
        %vm921 = vweird.f32 %v915
        %vm922 = vmor %vm920, %vm921
        %v923 = vsel %vm922, %v915, %v919
        %v924 = vand.u32 2147483647, %v808
        %vm925 = vcmp.eq.f32.partialorder %v924, 8.507059e+37
        %v926 = vand.u32 %v808, 2147483648
        %v927 = vor.u32 1.1754944e-38, %v926
        %v928 = vsel %vm925, %v927, %v923
        %v929 = vmul.f32 %v761, %v928
        %930 = vst.msk [vmem:[%s255] sm:$0xff] %vm314, %v824
        %931 = vst.msk [vmem:[%s255 + $0x8] sm:$0xff] %vm314, %v839
        %932 = vst.msk [vmem:[%s255 + $0x10] sm:$0xff] %vm314, %v854
        %933 = vst.msk [vmem:[%s255 + $0x18] sm:$0xff] %vm314, %v869
        %934 = vst.msk [vmem:[%s255 + $0x20] sm:$0xff] %vm314, %v884
        %935 = vst.msk [vmem:[%s255 + $0x28] sm:$0xff] %vm314, %v899
        %936 = vst.msk [vmem:[%s255 + $0x30] sm:$0xff] %vm314, %v914
        %937 = vst.msk [vmem:[%s255 + $0x38] sm:$0xff] %vm314, %v929
      $region40: #{tpu_custom_call.1} parent=31 // pred_fallthru
        _
      %s938 = smul.u32 8, %s20
      %p939 = scmp.lt.s32.totalorder %s19, 7
      %s940 = scalar_select %p939, %s19, 7
      %p941 = scmp.lt.s32.totalorder %s938, 7
      %s942 = scalar_select %p941, %s938, 7
      %s943 = smul.addr %s940, 8
      %s944 = sadd.s32 %s942, %s943
      %s945 = smul.addr %s944, 8
      %s946 = scalar_lea.vmem %s3, %s945
      // Predicated region
      $region41: #{tpu_custom_call.1} parent=31 // pred_check
        %p947 = pneg %p133
      $region42: #{tpu_custom_call.1} parent=31 // pred_check_branch
        %949 = sbr.rel (%p947) target = $region44
      $region43: #{tpu_custom_call.1} parent=31 // pred_region
        %s950 = smul.u32 8, %s20
      $region44: #{tpu_custom_call.1} parent=31 // pred_fallthru
        _
    $region32: #{tpu_custom_call.1} parent=5 // pred_fallthru
      _
    %p951 = scmp.le.s32.totalorder 2, %s9
    // Predicated region
    $region45: #{tpu_custom_call.1} parent=5 // pred_check
      %p952 = pneg %p951
    $region46: #{tpu_custom_call.1} parent=5 // pred_check_branch
      %954 = sbr.rel (%p952) target = $region48
    $region47: #{tpu_custom_call.1} parent=5 // pred_region
      %s955 = ssub.s32 %s9, 2
      // Predicated region
      $region49: #{tpu_custom_call.1} parent=47 // pred_check
        %p956 = pneg %p139
      $region50: #{tpu_custom_call.1} parent=47 // pred_check_branch
        %958 = sbr.rel (%p956) target = $region52
      $region51: #{tpu_custom_call.1} parent=47 // pred_region
        %s959 = smul.u32 8, %s23
        %p960 = scmp.lt.s32.totalorder %s22, 7
        %s961 = scalar_select %p960, %s22, 7
        %p962 = scmp.lt.s32.totalorder %s959, 7
        %s963 = scalar_select %p962, %s959, 7
        %s964 = smul.addr %s961, 8
        %s965 = sadd.s32 %s963, %s964
        %s966 = smul.addr %s965, 8
        %s967 = scalar_lea.vmem %s3, %s966
      $region52: #{tpu_custom_call.1} parent=47 // pred_fallthru
        _
    $region48: #{tpu_custom_call.1} parent=5 // pred_fallthru
      _
  $region6: #{tpu_custom_call.1} parent=0 // loop_footer
    %s13 = sadd.s32 1, %s9
  $region7: #{tpu_custom_call.1} parent=0 // loop_footer_branch
    %8 = sbr.rel target = $region3
  $region8: #{tpu_custom_call.1} parent=0 // loop_exit
    _

</llo_original>
